<compile_context>
chip_gen: v6e
topology: v6e:2x2x1
jax: 0.10.0
libtpu: 0.0.40
codegen_flags: <defaults>
</compile_context>

<pallas_src>
import functools

import jax
import jax.numpy as jnp
import numpy as np
from jax.experimental import pallas as pl
from jax.experimental.pallas import tpu as pltpu

EPS = 1e-5   # nn.BatchNorm1d default eps
LANE = 128


def _round_up(n, m=LANE):
    return ((n + m - 1) // m) * m


# ---------------- Fused Pallas kernel (embedding -> BN -> fc1 -> sigmoid -> fc2) ----------------

def _fused_kernel(x_ref, w_emb_ref, b_emb_ref, gamma_ref, beta_ref,
                  w1_ref, b1_ref, w2_ref, b2_ref, o_ref, *, batch, kshape, ep):
    # x_ref     : [B, K*I]      bf16
    # w_emb_ref : [K*I, K*Ep]   bf16   block-diagonal (block k = embedding weight)
    # b_emb_ref : [1, K*Ep]     f32    (embedding bias tiled per k block)
    # gamma/beta: [1, Ep]       f32
    # w1_ref    : [K*Ep, O1p]   bf16   (row k*Ep+e == torch fc1 weight row e*K+k)
    # b1_ref    : [1, O1p]      f32
    # w2_ref    : [O1p, Op]     bf16
    # b2_ref    : [1, Op]       f32
    # o_ref     : [B, Op]       f32
    n = batch * kshape  # number of BatchNorm samples

    # ---- embedding: one bf16 MXU matmul producing the already-flattened [B, K*Ep] ----
    y = jnp.dot(x_ref[...], w_emb_ref[...],
                preferred_element_type=jnp.float32) + b_emb_ref[...]      # [B, K*Ep] f32

    # ---- BatchNorm1d training-mode (biased) stats per embedding channel e, f32.
    # Column k*ep + e is channel e of sample (b, k): fold the K lane blocks with
    # static 128-aligned slices (whole-vreg selects, no relayout).
    blocks = [y[:, k * ep:(k + 1) * ep] for k in range(kshape)]           # K x [B, Ep]
    s = jnp.sum(blocks[0], axis=0, keepdims=True)
    for blk in blocks[1:]:
        s = s + jnp.sum(blk, axis=0, keepdims=True)
    mean = s * (1.0 / n)                                                  # [1, Ep]
    v = None
    for blk in blocks:
        d = blk - mean
        dv = jnp.sum(d * d, axis=0, keepdims=True)
        v = dv if v is None else v + dv
    var = v * (1.0 / n)                                                   # biased

    scale = gamma_ref[...] * jax.lax.rsqrt(var + EPS)                     # EUP rsqrt
    shift = beta_ref[...] - mean * scale
    scale_t = jnp.concatenate([scale] * kshape, axis=1)                   # [1, K*Ep]
    shift_t = jnp.concatenate([shift] * kshape, axis=1)
    # one FMA per element, then a single bf16 cast right at the MXU input
    y_bn = (y * scale_t + shift_t).astype(jnp.bfloat16)                   # [B, K*Ep] bf16

    # ---- fc1: single bf16 contraction over K*Ep, f32 accumulate, bias added once ----
    h = jnp.dot(y_bn, w1_ref[...], preferred_element_type=jnp.float32) + b1_ref[...]
    h = jax.nn.sigmoid(h)                                                 # f32 (EUP)
    h = h.astype(jnp.bfloat16)

    # ---- fc2 (bf16 x bf16 -> f32) ----
    o_ref[...] = jnp.dot(h, w2_ref[...],
                         preferred_element_type=jnp.float32) + b2_ref[...]  # [B, Op] f32


# ---------------- Wrapper ----------------

@functools.partial(jax.jit, static_argnames=("output_size",))
def mv_embedding_forward(x, params, *, output_size):
    B, K, I = x.shape
    KEp = params["w_emb"].shape[1]          # K * Ep
    Ep = params["gamma"].shape[1]
    O1p = params["w1"].shape[1]
    Op = params["w2"].shape[1]

    # Contiguous (free) reshape; no transpose, no extra HBM staging copy of x.
    x2 = x.reshape(B, K * I).astype(jnp.bfloat16)

    flops = 2 * B * (K * I) * KEp + 2 * B * KEp * O1p + 2 * B * O1p * Op
    bytes_accessed = (
        x2.size * 2
        + (params["w_emb"].size + params["w1"].size + params["w2"].size) * 2
        + (params["b_emb"].size + params["gamma"].size + params["beta"].size
           + params["b1"].size + params["b2"].size) * 4
        + B * Op * 4)
    cost = pl.CostEstimate(flops=flops,
                           transcendentals=B * O1p + Ep,
                           bytes_accessed=bytes_accessed)

    out_padded = pl.pallas_call(
        functools.partial(_fused_kernel, batch=B, kshape=K, ep=Ep),
        out_shape=jax.ShapeDtypeStruct((B, Op), jnp.float32),
        compiler_params=pltpu.CompilerParams(vmem_limit_bytes=8 * 1024 * 1024),
        cost_estimate=cost,
    )(x2, params["w_emb"], params["b_emb"], params["gamma"], params["beta"],
      params["w1"], params["b1"], params["w2"], params["b2"])

    return out_padded[:, :output_size]


# ---------------- Deterministic parameter init ----------------

def init_params(key, input_size, K, output_size, E):
    ks = jax.random.split(key, 6)
    I = input_size
    O1 = 10 * output_size
    Ep, O1p, Op = _round_up(E), _round_up(O1), _round_up(output_size)

    def unif(k, shape, fan_in):
        bound = 1.0 / np.sqrt(fan_in)
        return jax.random.uniform(k, shape, jnp.float32, -bound, bound)

    # Un-padded, torch-layout parameters; weights bf16-rounded so the kernel and the
    # pure-JAX reference consume numerically identical weight values.
    w_emb = unif(ks[0], (I, E), I).astype(jnp.bfloat16)
    b_emb = unif(ks[1], (E,), I)
    w1 = unif(ks[2], (E * K, O1), E * K).astype(jnp.bfloat16)   # input index = e*K + k
    b1 = unif(ks[3], (O1,), E * K)
    w2 = unif(ks[4], (O1, output_size), O1).astype(jnp.bfloat16)
    b2 = unif(ks[5], (output_size,), O1)
    gamma = jnp.ones((E,), jnp.float32)      # BatchNorm1d affine defaults
    beta = jnp.zeros((E,), jnp.float32)

    ref_params = dict(w_emb=w_emb.astype(jnp.float32), b_emb=b_emb,
                      w1=w1.astype(jnp.float32), b1=b1,
                      w2=w2.astype(jnp.float32), b2=b2,
                      gamma=gamma, beta=beta)

    # ---- padded / permuted kernel parameters (zero padding -> padded lanes contribute 0) ----
    # Block-diagonal embedding so y[b, k*Ep+e] = x[b, k*I:(k+1)*I] @ w_emb[:, e] + b_emb[e].
    w_emb_np = np.asarray(w_emb, np.float32)
    b_emb_np = np.asarray(b_emb)
    w_emb_bd = np.zeros((K * I, K * Ep), np.float32)
    b_emb_t = np.zeros((1, K * Ep), np.float32)
    for k in range(K):
        w_emb_bd[k * I:(k + 1) * I, k * Ep:k * Ep + E] = w_emb_np
        b_emb_t[0, k * Ep:k * Ep + E] = b_emb_np
    w_emb_bd = jnp.asarray(w_emb_bd, jnp.bfloat16)     # exact: bf16->f32->bf16 round trip
    b_emb_t = jnp.asarray(b_emb_t, jnp.float32)

    gamma_p = jnp.zeros((1, Ep), jnp.float32).at[0, :E].set(gamma)
    beta_p = jnp.zeros((1, Ep), jnp.float32).at[0, :E].set(beta)

    # torch flatten order after transpose+view is e*K + k; kernel column order is k*Ep + e.
    w1_keo = np.asarray(w1, np.float32).reshape(E, K, O1).transpose(1, 0, 2)   # [K, E, O1]
    w1_pad = np.zeros((K, Ep, O1p), np.float32)
    w1_pad[:, :E, :O1] = w1_keo
    w1_flat = jnp.asarray(w1_pad.reshape(K * Ep, O1p), jnp.bfloat16)

    b1_p = jnp.zeros((1, O1p), jnp.float32).at[0, :O1].set(b1)
    w2_p = jnp.zeros((O1p, Op), jnp.bfloat16).at[:O1, :output_size].set(w2)
    b2_p = jnp.zeros((1, Op), jnp.float32).at[0, :output_size].set(b2)

    kernel_params = dict(w_emb=w_emb_bd, b_emb=b_emb_t, gamma=gamma_p, beta=beta_p,
                         w1=w1_flat, b1=b1_p, w2=w2_p, b2=b2_p)
    return kernel_params, ref_params


# ---------------- Pure-JAX reference (mirrors the torch module exactly, f32 math) ----------------

def reference(x_bf16, p):
    x = x_bf16.astype(jnp.float32)
    B, K, _ = x.shape
    E = p["w_emb"].shape[1]
    y = jnp.einsum("bki,ie->bke", x, p["w_emb"]) + p["b_emb"]            # [B,K,E]
    yt = jnp.transpose(y, (0, 2, 1))                                      # [B,E,K]
    mean = jnp.mean(yt, axis=(0, 2), keepdims=True)
    var = jnp.mean(jnp.square(yt - mean), axis=(0, 2), keepdims=True)     # biased (training)
    yt = (yt - mean) / jnp.sqrt(var + EPS)
    yt = yt * p["gamma"][None, :, None] + p["beta"][None, :, None]
    z = yt.reshape(B, E * K)                                              # e*K + k order
    h = jax.nn.sigmoid(z @ p["w1"] + p["b1"])
    return h @ p["w2"] + p["b2"]


if __name__ == "__main__":
    # x = [batch, kernels_shape[0], input_size]
    B, K, I, E, O = 2, 4, 16, 32, 8
    key = jax.random.PRNGKey(0)
    kx, kp = jax.random.split(key)
    x = jax.random.normal(kx, (B, K, I), jnp.float32).astype(jnp.bfloat16)
    kernel_params, ref_params = init_params(kp, I, K, O, E)

    out = mv_embedding_forward(x, kernel_params, output_size=O)
    out = jax.block_until_ready(out)
    assert out.shape == (B, O)

    ref = reference(x, ref_params)
    # Kernel feeds the MXU bf16 activations (f32 accumulate); the reference is pure f32,
    # so tolerance is set for bf16-input matmuls. Structural bugs would be >> 2e-2.
    np.testing.assert_allclose(np.asarray(out), np.asarray(ref), rtol=2e-2, atol=2e-2)
    print("KERNEL_OK")
</pallas_src>

<mosaic_0001>
module attributes {stable_mosaic.version = 11 : i64} {
  func.func @_fused_kernel(%arg0: memref<2x64xbf16, #tpu.memory_space<vmem>>, %arg1: memref<64x512xbf16, #tpu.memory_space<vmem>>, %arg2: memref<1x512xf32, #tpu.memory_space<vmem>>, %arg3: memref<1x128xf32, #tpu.memory_space<vmem>>, %arg4: memref<1x128xf32, #tpu.memory_space<vmem>>, %arg5: memref<512x128xbf16, #tpu.memory_space<vmem>>, %arg6: memref<1x128xf32, #tpu.memory_space<vmem>>, %arg7: memref<128x128xbf16, #tpu.memory_space<vmem>>, %arg8: memref<1x128xf32, #tpu.memory_space<vmem>>, %arg9: memref<2x128xf32, #tpu.memory_space<vmem>>) attributes {dimension_semantics = [], scalar_prefetch = 0 : i64, scratch_operands = 0 : i64, tpu.core_type = #tpu.core_type<tc>} {
    %c0 = arith.constant 0 : index
    %c0_0 = arith.constant 0 : index
    %0 = vector.load %arg0[%c0, %c0_0] : memref<2x64xbf16, #tpu.memory_space<vmem>>, vector<2x64xbf16>
    %c0_1 = arith.constant 0 : index
    %c0_2 = arith.constant 0 : index
    %1 = vector.load %arg1[%c0_1, %c0_2] : memref<64x512xbf16, #tpu.memory_space<vmem>>, vector<64x512xbf16>
    %cst = arith.constant dense<0.000000e+00> : vector<2x512xf32>
    %2 = tpu.matmul %0, %1, %cst {dimension_numbers = #tpu.dot_dimension_numbers<[1], [0], [0], [1], [0, 0, 1, 1], [], []>} : vector<2x64xbf16>, vector<64x512xbf16>, vector<2x512xf32> -> vector<2x512xf32>
    %c0_3 = arith.constant 0 : index
    %c0_4 = arith.constant 0 : index
    %3 = vector.load %arg2[%c0_3, %c0_4] : memref<1x512xf32, #tpu.memory_space<vmem>>, vector<1x512xf32>
    %4 = vector.broadcast %3 : vector<1x512xf32> to vector<2x512xf32>
    %5 = arith.addf %2, %4 : vector<2x512xf32>
    %6 = vector.extract_strided_slice %5 {offsets = [0, 0], sizes = [2, 128], strides = [1, 1]} : vector<2x512xf32> to vector<2x128xf32>
    %7 = vector.extract_strided_slice %5 {offsets = [0, 128], sizes = [2, 128], strides = [1, 1]} : vector<2x512xf32> to vector<2x128xf32>
    %8 = vector.extract_strided_slice %5 {offsets = [0, 256], sizes = [2, 128], strides = [1, 1]} : vector<2x512xf32> to vector<2x128xf32>
    %9 = vector.extract_strided_slice %5 {offsets = [0, 384], sizes = [2, 128], strides = [1, 1]} : vector<2x512xf32> to vector<2x128xf32>
    %cst_5 = arith.constant dense<0.000000e+00> : vector<128xf32>
    %10 = vector.multi_reduction <add>, %6, %cst_5 [0] : vector<2x128xf32> to vector<128xf32>
    %11 = vector.shape_cast %10 : vector<128xf32> to vector<1x128xf32>
    %cst_6 = arith.constant dense<0.000000e+00> : vector<128xf32>
    %12 = vector.multi_reduction <add>, %7, %cst_6 [0] : vector<2x128xf32> to vector<128xf32>
    %13 = vector.shape_cast %12 : vector<128xf32> to vector<1x128xf32>
    %14 = arith.addf %11, %13 : vector<1x128xf32>
    %cst_7 = arith.constant dense<0.000000e+00> : vector<128xf32>
    %15 = vector.multi_reduction <add>, %8, %cst_7 [0] : vector<2x128xf32> to vector<128xf32>
    %16 = vector.shape_cast %15 : vector<128xf32> to vector<1x128xf32>
    %17 = arith.addf %14, %16 : vector<1x128xf32>
    %cst_8 = arith.constant dense<0.000000e+00> : vector<128xf32>
    %18 = vector.multi_reduction <add>, %9, %cst_8 [0] : vector<2x128xf32> to vector<128xf32>
    %19 = vector.shape_cast %18 : vector<128xf32> to vector<1x128xf32>
    %20 = arith.addf %17, %19 : vector<1x128xf32>
    %cst_9 = arith.constant 1.250000e-01 : f32
    %21 = vector.broadcast %cst_9 : f32 to vector<1x128xf32>
    %22 = arith.mulf %20, %21 : vector<1x128xf32>
    %23 = vector.broadcast %22 : vector<1x128xf32> to vector<2x128xf32>
    %24 = arith.subf %6, %23 : vector<2x128xf32>
    %25 = arith.mulf %24, %24 : vector<2x128xf32>
    %cst_10 = arith.constant dense<0.000000e+00> : vector<128xf32>
    %26 = vector.multi_reduction <add>, %25, %cst_10 [0] : vector<2x128xf32> to vector<128xf32>
    %27 = vector.shape_cast %26 : vector<128xf32> to vector<1x128xf32>
    %28 = vector.broadcast %22 : vector<1x128xf32> to vector<2x128xf32>
    %29 = arith.subf %7, %28 : vector<2x128xf32>
    %30 = arith.mulf %29, %29 : vector<2x128xf32>
    %cst_11 = arith.constant dense<0.000000e+00> : vector<128xf32>
    %31 = vector.multi_reduction <add>, %30, %cst_11 [0] : vector<2x128xf32> to vector<128xf32>
    %32 = vector.shape_cast %31 : vector<128xf32> to vector<1x128xf32>
    %33 = arith.addf %27, %32 : vector<1x128xf32>
    %34 = vector.broadcast %22 : vector<1x128xf32> to vector<2x128xf32>
    %35 = arith.subf %8, %34 : vector<2x128xf32>
    %36 = arith.mulf %35, %35 : vector<2x128xf32>
    %cst_12 = arith.constant dense<0.000000e+00> : vector<128xf32>
    %37 = vector.multi_reduction <add>, %36, %cst_12 [0] : vector<2x128xf32> to vector<128xf32>
    %38 = vector.shape_cast %37 : vector<128xf32> to vector<1x128xf32>
    %39 = arith.addf %33, %38 : vector<1x128xf32>
    %40 = vector.broadcast %22 : vector<1x128xf32> to vector<2x128xf32>
    %41 = arith.subf %9, %40 : vector<2x128xf32>
    %42 = arith.mulf %41, %41 : vector<2x128xf32>
    %cst_13 = arith.constant dense<0.000000e+00> : vector<128xf32>
    %43 = vector.multi_reduction <add>, %42, %cst_13 [0] : vector<2x128xf32> to vector<128xf32>
    %44 = vector.shape_cast %43 : vector<128xf32> to vector<1x128xf32>
    %45 = arith.addf %39, %44 : vector<1x128xf32>
    %cst_14 = arith.constant 1.250000e-01 : f32
    %46 = vector.broadcast %cst_14 : f32 to vector<1x128xf32>
    %47 = arith.mulf %45, %46 : vector<1x128xf32>
    %c0_15 = arith.constant 0 : index
    %c0_16 = arith.constant 0 : index
    %48 = vector.load %arg3[%c0_15, %c0_16] : memref<1x128xf32, #tpu.memory_space<vmem>>, vector<1x128xf32>
    %cst_17 = arith.constant 9.99999974E-6 : f32
    %49 = vector.broadcast %cst_17 : f32 to vector<1x128xf32>
    %50 = arith.addf %47, %49 : vector<1x128xf32>
    %51 = math.rsqrt %50 : vector<1x128xf32>
    %52 = arith.mulf %48, %51 : vector<1x128xf32>
    %c0_18 = arith.constant 0 : index
    %c0_19 = arith.constant 0 : index
    %53 = vector.load %arg4[%c0_18, %c0_19] : memref<1x128xf32, #tpu.memory_space<vmem>>, vector<1x128xf32>
    %54 = arith.mulf %22, %52 : vector<1x128xf32>
    %55 = arith.subf %53, %54 : vector<1x128xf32>
    %56 = tpu.concatenate %52, %52, %52, %52 in 1 : vector<1x128xf32>, vector<1x128xf32>, vector<1x128xf32>, vector<1x128xf32> -> vector<1x512xf32>
    %57 = tpu.concatenate %55, %55, %55, %55 in 1 : vector<1x128xf32>, vector<1x128xf32>, vector<1x128xf32>, vector<1x128xf32> -> vector<1x512xf32>
    %58 = vector.broadcast %56 : vector<1x512xf32> to vector<2x512xf32>
    %59 = arith.mulf %5, %58 : vector<2x512xf32>
    %60 = vector.broadcast %57 : vector<1x512xf32> to vector<2x512xf32>
    %61 = arith.addf %59, %60 : vector<2x512xf32>
    %62 = arith.truncf %61 : vector<2x512xf32> to vector<2x512xbf16>
    %c0_20 = arith.constant 0 : index
    %c0_21 = arith.constant 0 : index
    %63 = vector.load %arg5[%c0_20, %c0_21] : memref<512x128xbf16, #tpu.memory_space<vmem>>, vector<512x128xbf16>
    %cst_22 = arith.constant dense<0.000000e+00> : vector<2x128xf32>
    %64 = tpu.matmul %62, %63, %cst_22 {dimension_numbers = #tpu.dot_dimension_numbers<[1], [0], [0], [1], [0, 0, 1, 1], [], []>} : vector<2x512xbf16>, vector<512x128xbf16>, vector<2x128xf32> -> vector<2x128xf32>
    %c0_23 = arith.constant 0 : index
    %c0_24 = arith.constant 0 : index
    %65 = vector.load %arg6[%c0_23, %c0_24] : memref<1x128xf32, #tpu.memory_space<vmem>>, vector<1x128xf32>
    %66 = vector.broadcast %65 : vector<1x128xf32> to vector<2x128xf32>
    %67 = arith.addf %64, %66 : vector<2x128xf32>
    %68 = arith.negf %67 : vector<2x128xf32>
    %69 = math.exp %68 : vector<2x128xf32>
    %cst_25 = arith.constant 1.000000e+00 : f32
    %70 = vector.broadcast %cst_25 : f32 to vector<2x128xf32>
    %71 = arith.addf %70, %69 : vector<2x128xf32>
    %72 = arith.divf %70, %71 : vector<2x128xf32>
    %73 = arith.truncf %72 : vector<2x128xf32> to vector<2x128xbf16>
    %c0_26 = arith.constant 0 : index
    %c0_27 = arith.constant 0 : index
    %74 = vector.load %arg7[%c0_26, %c0_27] : memref<128x128xbf16, #tpu.memory_space<vmem>>, vector<128x128xbf16>
    %cst_28 = arith.constant dense<0.000000e+00> : vector<2x128xf32>
    %75 = tpu.matmul %73, %74, %cst_28 {dimension_numbers = #tpu.dot_dimension_numbers<[1], [0], [0], [1], [0, 0, 1, 1], [], []>} : vector<2x128xbf16>, vector<128x128xbf16>, vector<2x128xf32> -> vector<2x128xf32>
    %c0_29 = arith.constant 0 : index
    %c0_30 = arith.constant 0 : index
    %76 = vector.load %arg8[%c0_29, %c0_30] : memref<1x128xf32, #tpu.memory_space<vmem>>, vector<1x128xf32>
    %77 = vector.broadcast %76 : vector<1x128xf32> to vector<2x128xf32>
    %78 = arith.addf %75, %77 : vector<2x128xf32>
    %c0_31 = arith.constant 0 : index
    %c0_32 = arith.constant 0 : index
    %79 = vector.load %arg9[%c0_31, %c0_32] : memref<2x128xf32, #tpu.memory_space<vmem>>, vector<2x128xf32>
    tpu.vector_store %arg9[%c0_31, %c0_32], %78 {strides = array<i32>} : memref<2x128xf32, #tpu.memory_space<vmem>>, vector<2x128xf32>,
    return
  }
}

</mosaic_0001>

<llo_original>
// kernel: mv_embedding_forward.1
$region0: #{mv_embedding_forward.1}
  #allocation0 [shape = 'u32[]', space=smem, size = 0x4, offset = 0x4, fixed_abs, tag = 'smem constant byte address 0x4 - core index']
  #allocation1 [shape = 'u32[144,128]{1,0:T(1,128)}', space=vmem, size = 0x12000, scoped, tag = 'internal scratch']
  %s0 = inlined_call_operand.vmem [shape: bf16[2,64], index: 0, kind: input, shape index: {}]
  %s1 = inlined_call_operand.hbm [shape: bf16[64,512], index: 1, kind: input, shape index: {}]
  %s2 = inlined_call_operand.vmem [shape: f32[1,512], index: 2, kind: input, shape index: {}]
  %s3 = inlined_call_operand.vmem [shape: f32[1,128], index: 3, kind: input, shape index: {}]
  %s4 = inlined_call_operand.vmem [shape: f32[1,128], index: 4, kind: input, shape index: {}]
  %s5 = inlined_call_operand.hbm [shape: bf16[512,128], index: 5, kind: input, shape index: {}]
  %s6 = inlined_call_operand.vmem [shape: f32[1,128], index: 6, kind: input, shape index: {}]
  %s7 = inlined_call_operand.hbm [shape: bf16[128,128], index: 7, kind: input, shape index: {}]
  %s8 = inlined_call_operand.vmem [shape: f32[1,128], index: 8, kind: input, shape index: {}]
  %s9 = inlined_call_operand.hbm [shape: f32[2,128], index: 9, kind: output, shape index: {}]
  %s10 = sld [smem:[#allocation0]]
  $region58: #{mv_embedding_forward.1} parent=0
    _
  %s12 = ssub.s32 1, %s10
  %s13 = scalar_select 0, %s12, %s10
  $region1: #{mv_embedding_forward.1} parent=0
    #allocation2 [shape = 'u8[65536]{0}', space=vmem, size = 0x10000, scoped, tag = 'input window, operand 1, single buffered']
    #allocation3 [shape = 's32[1]{0}', space=sflag, size = 0x4, scoped, tag = 'scoped memory for mv_embedding_forward.1']
    #allocation4 [shape = 's32[1]{0}', space=sflag, size = 0x4, scoped, tag = 'scoped memory for mv_embedding_forward.1']
    #allocation5 [shape = 'u8[131072]{0}', space=vmem, size = 0x20000, scoped, tag = 'input window, operand 5, single buffered']
    #allocation6 [shape = 's32[1]{0}', space=sflag, size = 0x4, scoped, tag = 'scoped memory for mv_embedding_forward.1']
    #allocation7 [shape = 'u8[32768]{0}', space=vmem, size = 0x8000, scoped, tag = 'input window, operand 7, single buffered']
    #allocation8 [shape = 'u8[1024]{0}', space=vmem, size = 0x400, scoped, tag = 'output window, operand 0, single buffered']
    %14 = vsyncpa [#allocation3], 0
    %15 = vsyncpa [#allocation6], 0
    %16 = vsyncpa [#allocation4], 0
    // Predicated region
    $region2: #{mv_embedding_forward.1} parent=1 // pred_check
      _
    $region3: #{mv_embedding_forward.1} parent=1 // pred_check_branch
      %18 = sbr.rel (0) target = $region5
    $region4: #{mv_embedding_forward.1} parent=1 // pred_region
      _
    $region5: #{mv_embedding_forward.1} parent=1 // pred_fallthru
      _
    // Predicated region
    $region6: #{mv_embedding_forward.1} parent=1 // pred_check
      _
    $region7: #{mv_embedding_forward.1} parent=1 // pred_check_branch
      %20 = sbr.rel (0) target = $region9
    $region8: #{mv_embedding_forward.1} parent=1 // pred_region
      %s22 = ssub.s32 2048, 2048
      %23 = vsyncadd [#allocation3], %s22
      %s24 = sshll.u32 [#allocation2], 4
      %s25 = int_to_ptr.vmem [resolvable:$true] %s24
      %30 = dma.hbm_to_vmem [thread:$0]  %s1, 2048, %s25, [#allocation3], 256, 256, 16
    $region9: #{mv_embedding_forward.1} parent=1 // pred_fallthru
      _
    // Predicated region
    $region10: #{mv_embedding_forward.1} parent=1 // pred_check
      _
    $region11: #{mv_embedding_forward.1} parent=1 // pred_check_branch
      %32 = sbr.rel (0) target = $region13
    $region12: #{mv_embedding_forward.1} parent=1 // pred_region
      _
    $region13: #{mv_embedding_forward.1} parent=1 // pred_fallthru
      _
    // Predicated region
    $region14: #{mv_embedding_forward.1} parent=1 // pred_check
      _
    $region15: #{mv_embedding_forward.1} parent=1 // pred_check_branch
      %34 = sbr.rel (0) target = $region17
    $region16: #{mv_embedding_forward.1} parent=1 // pred_region
      _
    $region17: #{mv_embedding_forward.1} parent=1 // pred_fallthru
      _
    // Predicated region
    $region18: #{mv_embedding_forward.1} parent=1 // pred_check
      _
    $region19: #{mv_embedding_forward.1} parent=1 // pred_check_branch
      %36 = sbr.rel (0) target = $region21
    $region20: #{mv_embedding_forward.1} parent=1 // pred_region
      _
    $region21: #{mv_embedding_forward.1} parent=1 // pred_fallthru
      _
    // Predicated region
    $region22: #{mv_embedding_forward.1} parent=1 // pred_check
      _
    $region23: #{mv_embedding_forward.1} parent=1 // pred_check_branch
      %38 = sbr.rel (0) target = $region25
    $region24: #{mv_embedding_forward.1} parent=1 // pred_region
      %s40 = ssub.s32 4096, 4096
      %41 = vsyncadd [#allocation6], %s40
      %s42 = sshll.u32 [#allocation5], 4
      %s43 = int_to_ptr.vmem [resolvable:$true] %s42
      %48 = dma.hbm_to_vmem [thread:$0]  %s5, 4096, %s43, [#allocation6], 64, 64, 4
    $region25: #{mv_embedding_forward.1} parent=1 // pred_fallthru
      _
    // Predicated region
    $region26: #{mv_embedding_forward.1} parent=1 // pred_check
      _
    $region27: #{mv_embedding_forward.1} parent=1 // pred_check_branch
      %50 = sbr.rel (0) target = $region29
    $region28: #{mv_embedding_forward.1} parent=1 // pred_region
      _
    $region29: #{mv_embedding_forward.1} parent=1 // pred_fallthru
      _
    // Predicated region
    $region30: #{mv_embedding_forward.1} parent=1 // pred_check
      _
    $region31: #{mv_embedding_forward.1} parent=1 // pred_check_branch
      %52 = sbr.rel (0) target = $region33
    $region32: #{mv_embedding_forward.1} parent=1 // pred_region
      %s54 = ssub.s32 1024, 1024
      %55 = vsyncadd [#allocation6], %s54
      %s56 = sshll.u32 [#allocation7], 4
      %s57 = int_to_ptr.vmem [resolvable:$true] %s56
      %62 = dma.hbm_to_vmem [thread:$0]  %s7, 1024, %s57, [#allocation6], 64, 64, 4
    $region33: #{mv_embedding_forward.1} parent=1 // pred_fallthru
      _
    // Predicated region
    $region34: #{mv_embedding_forward.1} parent=1 // pred_check
      _
    $region35: #{mv_embedding_forward.1} parent=1 // pred_check_branch
      %64 = sbr.rel (0) target = $region37
    $region36: #{mv_embedding_forward.1} parent=1 // pred_region
      _
    $region37: #{mv_embedding_forward.1} parent=1 // pred_fallthru
      _
    // Predicated region
    $region38: #{mv_embedding_forward.1} parent=1 // pred_check
      _
    $region39: #{mv_embedding_forward.1} parent=1 // pred_check_branch
      %66 = sbr.rel (0) target = $region41
    $region40: #{mv_embedding_forward.1} parent=1 // pred_region
      %67 = dma.done [#allocation3], 2048
    $region41: #{mv_embedding_forward.1} parent=1 // pred_fallthru
      _
    // Predicated region
    $region42: #{mv_embedding_forward.1} parent=1 // pred_check
      _
    $region43: #{mv_embedding_forward.1} parent=1 // pred_check_branch
      %69 = sbr.rel (0) target = $region45
    $region44: #{mv_embedding_forward.1} parent=1 // pred_region
      %70 = dma.done [#allocation6], 4096
    $region45: #{mv_embedding_forward.1} parent=1 // pred_fallthru
      _
    // Predicated region
    $region46: #{mv_embedding_forward.1} parent=1 // pred_check
      _
    $region47: #{mv_embedding_forward.1} parent=1 // pred_check_branch
      %72 = sbr.rel (0) target = $region49
    $region48: #{mv_embedding_forward.1} parent=1 // pred_region
      %73 = dma.done [#allocation6], 1024
    $region49: #{mv_embedding_forward.1} parent=1 // pred_fallthru
      _
    %v75 = vld [vmem:[%s0] sm:$0x1]
    %v76 = vld [vmem:[#allocation2] sm:$0xff]
    %v77 = vld [vmem:[#allocation2 + $0x8] sm:$0xff]
    %v78 = vld [vmem:[#allocation2 + $0x10] sm:$0xff]
    %v79 = vld [vmem:[#allocation2 + $0x18] sm:$0xff]
    %v80 = vld [vmem:[#allocation2 + $0x20] sm:$0xff]
    %v81 = vld [vmem:[#allocation2 + $0x28] sm:$0xff]
    %v82 = vld [vmem:[#allocation2 + $0x30] sm:$0xff]
    %v83 = vld [vmem:[#allocation2 + $0x38] sm:$0xff]
    %v84 = vld [vmem:[#allocation2 + $0x40] sm:$0xff]
    %v85 = vld [vmem:[#allocation2 + $0x48] sm:$0xff]
    %v86 = vld [vmem:[#allocation2 + $0x50] sm:$0xff]
    %v87 = vld [vmem:[#allocation2 + $0x58] sm:$0xff]
    %v88 = vld [vmem:[#allocation2 + $0x60] sm:$0xff]
    %v89 = vld [vmem:[#allocation2 + $0x68] sm:$0xff]
    %v90 = vld [vmem:[#allocation2 + $0x70] sm:$0xff]
    %v91 = vld [vmem:[#allocation2 + $0x78] sm:$0xff]
    %v92 = vld [vmem:[%s2] sm:$0xf]
    %v94 = vlaneseq
    %v95 = vshrl.u32 %v94, 7
    %v96 = vsub.s32 0, %v95
    %v97 = vrot.slane %v92, %v96
    %v98 = vlaneseq
    %v99 = vshrl.u32 %v98, 7
    %v100 = vsub.s32 1, %v99
    %v101 = vrot.slane %v92, %v100
    %v102 = vlaneseq
    %v103 = vshrl.u32 %v102, 7
    %v104 = vsub.s32 2, %v103
    %v105 = vrot.slane %v92, %v104
    %v106 = vlaneseq
    %v107 = vshrl.u32 %v106, 7
    %v108 = vsub.s32 3, %v107
    %v109 = vrot.slane %v92, %v108
    %v130 = vunpack.c.l.b16 %v76
    %v131 = vunpack.c.h.b16 %v76
    %v132 = vunpack.c.l.b16 %v77
    %v133 = vunpack.c.h.b16 %v77
    %v134 = vunpack.c.l.b16 %v78
    %v135 = vunpack.c.h.b16 %v78
    %v136 = vunpack.c.l.b16 %v79
    %v137 = vunpack.c.h.b16 %v79
    %v138 = vunpack.c.l.b16 %v80
    %v139 = vunpack.c.h.b16 %v80
    %v140 = vunpack.c.l.b16 %v81
    %v141 = vunpack.c.h.b16 %v81
    %v142 = vunpack.c.l.b16 %v82
    %v143 = vunpack.c.h.b16 %v82
    %v144 = vunpack.c.l.b16 %v83
    %v145 = vunpack.c.h.b16 %v83
    %v146 = vunpack.c.l.b16 %v84
    %v147 = vunpack.c.h.b16 %v84
    %v148 = vunpack.c.l.b16 %v85
    %v149 = vunpack.c.h.b16 %v85
    %v150 = vunpack.c.l.b16 %v86
    %v151 = vunpack.c.h.b16 %v86
    %v152 = vunpack.c.l.b16 %v87
    %v153 = vunpack.c.h.b16 %v87
    %v154 = vunpack.c.l.b16 %v88
    %v155 = vunpack.c.h.b16 %v88
    %v156 = vunpack.c.l.b16 %v89
    %v157 = vunpack.c.h.b16 %v89
    %v158 = vunpack.c.l.b16 %v90
    %v159 = vunpack.c.h.b16 %v90
    %v160 = vunpack.c.l.b16 %v91
    %v161 = vunpack.c.h.b16 %v91
    %v162 = vpack.c.b16 %v134, %v130
    %v163 = vpack.c.b16 %v135, %v131
    %v164 = vpack.c.b16 %v136, %v132
    %v165 = vpack.c.b16 %v137, %v133
    %v166 = vpack.c.b16 %v142, %v138
    %v167 = vpack.c.b16 %v143, %v139
    %v168 = vpack.c.b16 %v144, %v140
    %v169 = vpack.c.b16 %v145, %v141
    %v170 = vpack.c.b16 %v150, %v146
    %v171 = vpack.c.b16 %v151, %v147
    %v172 = vpack.c.b16 %v152, %v148
    %v173 = vpack.c.b16 %v153, %v149
    %v174 = vpack.c.b16 %v158, %v154
    %v175 = vpack.c.b16 %v159, %v155
    %v176 = vpack.c.b16 %v160, %v156
    %v177 = vpack.c.b16 %v161, %v157
    %vm194 = vcmask 523264
    %v196 = vsel %vm194, %v75, 0
    %198 = vmatprep.subr.bf16.mxu0 0
    %199 = vmatpush1.bf16.msra.mxu0 0
    %200 = vmatprep.subr.bf16.mxu0 0
    %201 = vmatpush1.bf16.msra.mxu0 0
    %202 = vmatprep.subr.bf16.mxu0 0
    %203 = vmatpush1.bf16.msra.mxu0 0
    %204 = vmatprep.subr.bf16.mxu0 0
    %205 = vmatpush1.bf16.msra.mxu0 0
    %206 = vmatprep.subr.bf16.mxu0 %v175
    %207 = vmatpush1.bf16.msra.mxu0 %v174
    %208 = vmatprep.subr.bf16.mxu0 %v171
    %209 = vmatpush1.bf16.msra.mxu0 %v170
    %210 = vmatprep.subr.bf16.mxu0 %v167
    %211 = vmatpush1.bf16.msra.mxu0 %v166
    %212 = vmatprep.subr.bf16.mxu0 %v163
    %213 = vmatpush1.bf16.msra.mxu0 %v162
    %214 = vmatprep.subr.bf16.mxu0 0
    %215 = vmatpush2.bf16.msra.mxu0 0
    %216 = vmatprep.subr.bf16.mxu0 0
    %217 = vmatpush2.bf16.msra.mxu0 0
    %218 = vmatprep.subr.bf16.mxu0 0
    %219 = vmatpush2.bf16.msra.mxu0 0
    %220 = vmatprep.subr.bf16.mxu0 0
    %221 = vmatpush2.bf16.msra.mxu0 0
    %222 = vmatprep.subr.bf16.mxu0 0
    %223 = vmatpush2.bf16.msra.mxu0 0
    %224 = vmatprep.subr.bf16.mxu0 0
    %225 = vmatpush2.bf16.msra.mxu0 0
    %226 = vmatprep.subr.bf16.mxu0 0
    %227 = vmatpush2.bf16.msra.mxu0 0
    %228 = vmatprep.subr.bf16.mxu0 0
    %229 = vmatpush2.bf16.msra.mxu0 0
    %230 = vmatprep.mubr.bf16.mxu0 0
    %231 = vmatmul.mubr.bf16.gmra.mxu0 %v196
    %v232 = vpop.f32.mrf.mxu0
    %v233 = vadd.f32 %v97, %v232
    %v234 = vpop.f32.mrf.mxu0
    %v235 = vadd.f32 %v101, %v234
    %v236 = vpop.f32.mrf.mxu0
    %v237 = vpop.f32.mrf.mxu0
    %238 = vdwg.mxu0
    %239 = vmatprep.subr.bf16.mxu0 0
    %240 = vmatpush1.bf16.msra.mxu0 0
    %241 = vmatprep.subr.bf16.mxu0 0
    %242 = vmatpush1.bf16.msra.mxu0 0
    %243 = vmatprep.subr.bf16.mxu0 0
    %244 = vmatpush1.bf16.msra.mxu0 0
    %245 = vmatprep.subr.bf16.mxu0 0
    %246 = vmatpush1.bf16.msra.mxu0 0
    %247 = vmatprep.subr.bf16.mxu0 %v177
    %248 = vmatpush1.bf16.msra.mxu0 %v176
    %249 = vmatprep.subr.bf16.mxu0 %v173
    %250 = vmatpush1.bf16.msra.mxu0 %v172
    %251 = vmatprep.subr.bf16.mxu0 %v169
    %252 = vmatpush1.bf16.msra.mxu0 %v168
    %253 = vmatprep.subr.bf16.mxu0 %v165
    %254 = vmatpush1.bf16.msra.mxu0 %v164
    %255 = vmatprep.subr.bf16.mxu0 0
    %256 = vmatpush2.bf16.msra.mxu0 0
    %257 = vmatprep.subr.bf16.mxu0 0
    %258 = vmatpush2.bf16.msra.mxu0 0
    %259 = vmatprep.subr.bf16.mxu0 0
    %260 = vmatpush2.bf16.msra.mxu0 0
    %261 = vmatprep.subr.bf16.mxu0 0
    %262 = vmatpush2.bf16.msra.mxu0 0
    %263 = vmatprep.subr.bf16.mxu0 0
    %264 = vmatpush2.bf16.msra.mxu0 0
    %265 = vmatprep.subr.bf16.mxu0 0
    %266 = vmatpush2.bf16.msra.mxu0 0
    %267 = vmatprep.subr.bf16.mxu0 0
    %268 = vmatpush2.bf16.msra.mxu0 0
    %269 = vmatprep.subr.bf16.mxu0 0
    %270 = vmatpush2.bf16.msra.mxu0 0
    %271 = vmatprep.mubr.bf16.mxu0 0
    %272 = vmatmul.mubr.bf16.gmra.mxu0 %v196
    %v273 = vpop.f32.mrf.mxu0
    %v274 = vadd.f32 %v105, %v273
    %v275 = vpop.f32.mrf.mxu0
    %v276 = vadd.f32 %v109, %v275
    %v277 = vpop.f32.mrf.mxu0
    %v278 = vpop.f32.mrf.mxu0
    %279 = vdwg.mxu0
    %vm280 = vcmask 1041408
    %v281 = vsel %vm280, %v233, 0.0
    %v282 = vrot.slane %v281, 4
    %v283 = vadd.f32 %v281, %v282
    %v284 = vrot.slane %v283, 2
    %v285 = vadd.f32 %v283, %v284
    %v286 = vrot.slane %v285, 1
    %v287 = vadd.f32 %v285, %v286
    %v288 = vsel %vm280, %v235, 0.0
    %v289 = vrot.slane %v288, 4
    %v290 = vadd.f32 %v288, %v289
    %v291 = vrot.slane %v290, 2
    %v292 = vadd.f32 %v290, %v291
    %v293 = vrot.slane %v292, 1
    %v294 = vadd.f32 %v292, %v293
    %v295 = vadd.f32 %v287, %v294
    %v296 = vsel %vm280, %v274, 0.0
    %v297 = vrot.slane %v296, 4
    %v298 = vadd.f32 %v296, %v297
    %v299 = vrot.slane %v298, 2
    %v300 = vadd.f32 %v298, %v299
    %v301 = vrot.slane %v300, 1
    %v302 = vadd.f32 %v300, %v301
    %v303 = vadd.f32 %v295, %v302
    %v304 = vsel %vm280, %v276, 0.0
    %v305 = vrot.slane %v304, 4
    %v306 = vadd.f32 %v304, %v305
    %v307 = vrot.slane %v306, 2
    %v308 = vadd.f32 %v306, %v307
    %v309 = vrot.slane %v308, 1
    %v310 = vadd.f32 %v308, %v309
    %v311 = vadd.f32 %v303, %v310
    %v312 = vmul.f32 %v311, 0.125
    %v313 = vsub.f32 %v233, %v312
    %v314 = vmul.f32 %v313, %v313
    %v315 = vsel %vm280, %v314, 0.0
    %v316 = vrot.slane %v315, 4
    %v317 = vadd.f32 %v315, %v316
    %v318 = vrot.slane %v317, 2
    %v319 = vadd.f32 %v317, %v318
    %v320 = vrot.slane %v319, 1
    %v321 = vadd.f32 %v319, %v320
    %v322 = vsub.f32 %v235, %v312
    %v323 = vmul.f32 %v322, %v322
    %v324 = vsel %vm280, %v323, 0.0
    %v325 = vrot.slane %v324, 4
    %v326 = vadd.f32 %v324, %v325
    %v327 = vrot.slane %v326, 2
    %v328 = vadd.f32 %v326, %v327
    %v329 = vrot.slane %v328, 1
    %v330 = vadd.f32 %v328, %v329
    %v331 = vadd.f32 %v321, %v330
    %v332 = vsub.f32 %v274, %v312
    %v333 = vmul.f32 %v332, %v332
    %v334 = vsel %vm280, %v333, 0.0
    %v335 = vrot.slane %v334, 4
    %v336 = vadd.f32 %v334, %v335
    %v337 = vrot.slane %v336, 2
    %v338 = vadd.f32 %v336, %v337
    %v339 = vrot.slane %v338, 1
    %v340 = vadd.f32 %v338, %v339
    %v341 = vadd.f32 %v331, %v340
    %v342 = vsub.f32 %v276, %v312
    %v343 = vmul.f32 %v342, %v342
    %v344 = vsel %vm280, %v343, 0.0
    %v345 = vrot.slane %v344, 4
    %v346 = vadd.f32 %v344, %v345
    %v347 = vrot.slane %v346, 2
    %v348 = vadd.f32 %v346, %v347
    %v349 = vrot.slane %v348, 1
    %v350 = vadd.f32 %v348, %v349
    %v351 = vadd.f32 %v341, %v350
    %v352 = vmul.f32 %v351, 0.125
    %v353 = vld [vmem:[%s3] sm:$0x1]
    %v354 = vadd.f32 %v352, 1e-05
    %v355 = vrsqrt.pop %v354
    %v356 = vmul.f32 %v353, %v355
    %v357 = vld [vmem:[%s4] sm:$0x1]
    %v358 = vmul.f32 %v312, %v356
    %v359 = vsub.f32 %v357, %v358
    %v360 = vlaneseq
    %v361 = vshrl.u32 %v360, 7
    %v362 = vsub.s32 0, %v361
    %v363 = vrot.slane %v356, %v362
    %v364 = vmul.f32 %v233, %v363
    %v365 = vmul.f32 %v235, %v363
    %v366 = vmul.f32 %v274, %v363
    %v367 = vmul.f32 %v276, %v363
    %v368 = vlaneseq
    %v369 = vshrl.u32 %v368, 7
    %v370 = vsub.s32 0, %v369
    %v371 = vrot.slane %v359, %v370
    %v372 = vadd.f32 %v364, %v371
    %v373 = vadd.f32 %v365, %v371
    %v374 = vadd.f32 %v366, %v371
    %v375 = vadd.f32 %v367, %v371
    %v376 = vpack.c.bf16 %v372, %v372
    %v377 = vpack.c.bf16 %v373, %v373
    %v378 = vpack.c.bf16 %v374, %v374
    %v379 = vpack.c.bf16 %v375, %v375
    %v380 = vld [vmem:[#allocation5] sm:$0xf]
    %v381 = vld [vmem:[#allocation5 + $0x4] sm:$0xf]
    %v382 = vld [vmem:[#allocation5 + $0x8] sm:$0xf]
    %v383 = vld [vmem:[#allocation5 + $0xc] sm:$0xf]
    %v384 = vld [vmem:[#allocation5 + $0x10] sm:$0xf]
    %v385 = vld [vmem:[#allocation5 + $0x14] sm:$0xf]
    %v386 = vld [vmem:[#allocation5 + $0x18] sm:$0xf]
    %v387 = vld [vmem:[#allocation5 + $0x1c] sm:$0xf]
    %v388 = vld [vmem:[#allocation5 + $0x20] sm:$0xf]
    %v389 = vld [vmem:[#allocation5 + $0x24] sm:$0xf]
    %v390 = vld [vmem:[#allocation5 + $0x28] sm:$0xf]
    %v391 = vld [vmem:[#allocation5 + $0x2c] sm:$0xf]
    %v392 = vld [vmem:[#allocation5 + $0x30] sm:$0xf]
    %v393 = vld [vmem:[#allocation5 + $0x34] sm:$0xf]
    %v394 = vld [vmem:[#allocation5 + $0x38] sm:$0xf]
    %v395 = vld [vmem:[#allocation5 + $0x3c] sm:$0xf]
    %v396 = vld [vmem:[#allocation5 + $0x40] sm:$0xf]
    %v397 = vld [vmem:[#allocation5 + $0x44] sm:$0xf]
    %v398 = vld [vmem:[#allocation5 + $0x48] sm:$0xf]
    %v399 = vld [vmem:[#allocation5 + $0x4c] sm:$0xf]
    %v400 = vld [vmem:[#allocation5 + $0x50] sm:$0xf]
    %v401 = vld [vmem:[#allocation5 + $0x54] sm:$0xf]
    %v402 = vld [vmem:[#allocation5 + $0x58] sm:$0xf]
    %v403 = vld [vmem:[#allocation5 + $0x5c] sm:$0xf]
    %v404 = vld [vmem:[#allocation5 + $0x60] sm:$0xf]
    %v405 = vld [vmem:[#allocation5 + $0x64] sm:$0xf]
    %v406 = vld [vmem:[#allocation5 + $0x68] sm:$0xf]
    %v407 = vld [vmem:[#allocation5 + $0x6c] sm:$0xf]
    %v408 = vld [vmem:[#allocation5 + $0x70] sm:$0xf]
    %v409 = vld [vmem:[#allocation5 + $0x74] sm:$0xf]
    %v410 = vld [vmem:[#allocation5 + $0x78] sm:$0xf]
    %v411 = vld [vmem:[#allocation5 + $0x7c] sm:$0xf]
    %v412 = vld [vmem:[#allocation5 + $0x80] sm:$0xf]
    %v413 = vld [vmem:[#allocation5 + $0x84] sm:$0xf]
    %v414 = vld [vmem:[#allocation5 + $0x88] sm:$0xf]
    %v415 = vld [vmem:[#allocation5 + $0x8c] sm:$0xf]
    %v416 = vld [vmem:[#allocation5 + $0x90] sm:$0xf]
    %v417 = vld [vmem:[#allocation5 + $0x94] sm:$0xf]
    %v418 = vld [vmem:[#allocation5 + $0x98] sm:$0xf]
    %v419 = vld [vmem:[#allocation5 + $0x9c] sm:$0xf]
    %v420 = vld [vmem:[#allocation5 + $0xa0] sm:$0xf]
    %v421 = vld [vmem:[#allocation5 + $0xa4] sm:$0xf]
    %v422 = vld [vmem:[#allocation5 + $0xa8] sm:$0xf]
    %v423 = vld [vmem:[#allocation5 + $0xac] sm:$0xf]
    %v424 = vld [vmem:[#allocation5 + $0xb0] sm:$0xf]
    %v425 = vld [vmem:[#allocation5 + $0xb4] sm:$0xf]
    %v426 = vld [vmem:[#allocation5 + $0xb8] sm:$0xf]
    %v427 = vld [vmem:[#allocation5 + $0xbc] sm:$0xf]
    %v428 = vld [vmem:[#allocation5 + $0xc0] sm:$0xf]
    %v429 = vld [vmem:[#allocation5 + $0xc4] sm:$0xf]
    %v430 = vld [vmem:[#allocation5 + $0xc8] sm:$0xf]
    %v431 = vld [vmem:[#allocation5 + $0xcc] sm:$0xf]
    %v432 = vld [vmem:[#allocation5 + $0xd0] sm:$0xf]
    %v433 = vld [vmem:[#allocation5 + $0xd4] sm:$0xf]
    %v434 = vld [vmem:[#allocation5 + $0xd8] sm:$0xf]
    %v435 = vld [vmem:[#allocation5 + $0xdc] sm:$0xf]
    %v436 = vld [vmem:[#allocation5 + $0xe0] sm:$0xf]
    %v437 = vld [vmem:[#allocation5 + $0xe4] sm:$0xf]
    %v438 = vld [vmem:[#allocation5 + $0xe8] sm:$0xf]
    %v439 = vld [vmem:[#allocation5 + $0xec] sm:$0xf]
    %v440 = vld [vmem:[#allocation5 + $0xf0] sm:$0xf]
    %v441 = vld [vmem:[#allocation5 + $0xf4] sm:$0xf]
    %v442 = vld [vmem:[#allocation5 + $0xf8] sm:$0xf]
    %v443 = vld [vmem:[#allocation5 + $0xfc] sm:$0xf]
    %v444 = vld [vmem:[%s6] sm:$0x1]
    %v446 = vlaneseq
    %v447 = vshrl.u32 %v446, 7
    %v448 = vsub.s32 0, %v447
    %v449 = vrot.slane %v444, %v448
    %v515 = vunpack.c.l.b16 %v380
    %v516 = vunpack.c.l.b16 %v381
    %v517 = vunpack.c.l.b16 %v382
    %v518 = vunpack.c.l.b16 %v383
    %v519 = vunpack.c.l.b16 %v384
    %v520 = vunpack.c.l.b16 %v385
    %v521 = vunpack.c.l.b16 %v386
    %v522 = vunpack.c.l.b16 %v387
    %v523 = vunpack.c.l.b16 %v388
    %v524 = vunpack.c.l.b16 %v389
    %v525 = vunpack.c.l.b16 %v390
    %v526 = vunpack.c.l.b16 %v391
    %v527 = vunpack.c.l.b16 %v392
    %v528 = vunpack.c.l.b16 %v393
    %v529 = vunpack.c.l.b16 %v394
    %v530 = vunpack.c.l.b16 %v395
    %v531 = vunpack.c.l.b16 %v396
    %v532 = vunpack.c.l.b16 %v397
    %v533 = vunpack.c.l.b16 %v398
    %v534 = vunpack.c.l.b16 %v399
    %v535 = vunpack.c.l.b16 %v400
    %v536 = vunpack.c.l.b16 %v401
    %v537 = vunpack.c.l.b16 %v402
    %v538 = vunpack.c.l.b16 %v403
    %v539 = vunpack.c.l.b16 %v404
    %v540 = vunpack.c.l.b16 %v405
    %v541 = vunpack.c.l.b16 %v406
    %v542 = vunpack.c.l.b16 %v407
    %v543 = vunpack.c.l.b16 %v408
    %v544 = vunpack.c.l.b16 %v409
    %v545 = vunpack.c.l.b16 %v410
    %v546 = vunpack.c.l.b16 %v411
    %v547 = vunpack.c.l.b16 %v412
    %v548 = vunpack.c.l.b16 %v413
    %v549 = vunpack.c.l.b16 %v414
    %v550 = vunpack.c.l.b16 %v415
    %v551 = vunpack.c.l.b16 %v416
    %v552 = vunpack.c.l.b16 %v417
    %v553 = vunpack.c.l.b16 %v418
    %v554 = vunpack.c.l.b16 %v419
    %v555 = vunpack.c.l.b16 %v420
    %v556 = vunpack.c.l.b16 %v421
    %v557 = vunpack.c.l.b16 %v422
    %v558 = vunpack.c.l.b16 %v423
    %v559 = vunpack.c.l.b16 %v424
    %v560 = vunpack.c.l.b16 %v425
    %v561 = vunpack.c.l.b16 %v426
    %v562 = vunpack.c.l.b16 %v427
    %v563 = vunpack.c.l.b16 %v428
    %v564 = vunpack.c.l.b16 %v429
    %v565 = vunpack.c.l.b16 %v430
    %v566 = vunpack.c.l.b16 %v431
    %v567 = vunpack.c.l.b16 %v432
    %v568 = vunpack.c.l.b16 %v433
    %v569 = vunpack.c.l.b16 %v434
    %v570 = vunpack.c.l.b16 %v435
    %v571 = vunpack.c.l.b16 %v436
    %v572 = vunpack.c.l.b16 %v437
    %v573 = vunpack.c.l.b16 %v438
    %v574 = vunpack.c.l.b16 %v439
    %v575 = vunpack.c.l.b16 %v440
    %v576 = vunpack.c.l.b16 %v441
    %v577 = vunpack.c.l.b16 %v442
    %v578 = vunpack.c.l.b16 %v443
    %v579 = vpack.c.b16 %v516, %v515
    %v580 = vpack.c.b16 %v518, %v517
    %v581 = vpack.c.b16 %v520, %v519
    %v582 = vpack.c.b16 %v522, %v521
    %v583 = vpack.c.b16 %v524, %v523
    %v584 = vpack.c.b16 %v526, %v525
    %v585 = vpack.c.b16 %v528, %v527
    %v586 = vpack.c.b16 %v530, %v529
    %v587 = vpack.c.b16 %v532, %v531
    %v588 = vpack.c.b16 %v534, %v533
    %v589 = vpack.c.b16 %v536, %v535
    %v590 = vpack.c.b16 %v538, %v537
    %v591 = vpack.c.b16 %v540, %v539
    %v592 = vpack.c.b16 %v542, %v541
    %v593 = vpack.c.b16 %v544, %v543
    %v594 = vpack.c.b16 %v546, %v545
    %v595 = vpack.c.b16 %v548, %v547
    %v596 = vpack.c.b16 %v550, %v549
    %v597 = vpack.c.b16 %v552, %v551
    %v598 = vpack.c.b16 %v554, %v553
    %v599 = vpack.c.b16 %v556, %v555
    %v600 = vpack.c.b16 %v558, %v557
    %v601 = vpack.c.b16 %v560, %v559
    %v602 = vpack.c.b16 %v562, %v561
    %v603 = vpack.c.b16 %v564, %v563
    %v604 = vpack.c.b16 %v566, %v565
    %v605 = vpack.c.b16 %v568, %v567
    %v606 = vpack.c.b16 %v570, %v569
    %v607 = vpack.c.b16 %v572, %v571
    %v608 = vpack.c.b16 %v574, %v573
    %v609 = vpack.c.b16 %v576, %v575
    %v610 = vpack.c.b16 %v578, %v577
    %643 = vmatprep.subr.bf16.mxu0 0
    %644 = vmatpush1.bf16.msra.mxu0 %v586
    %645 = vmatprep.subr.bf16.mxu0 0
    %646 = vmatpush1.bf16.msra.mxu0 %v585
    %647 = vmatprep.subr.bf16.mxu0 0
    %648 = vmatpush1.bf16.msra.mxu0 %v584
    %649 = vmatprep.subr.bf16.mxu0 0
    %650 = vmatpush1.bf16.msra.mxu0 %v583
    %651 = vmatprep.subr.bf16.mxu0 0
    %652 = vmatpush1.bf16.msra.mxu0 %v582
    %653 = vmatprep.subr.bf16.mxu0 0
    %654 = vmatpush1.bf16.msra.mxu0 %v581
    %655 = vmatprep.subr.bf16.mxu0 0
    %656 = vmatpush1.bf16.msra.mxu0 %v580
    %657 = vmatprep.subr.bf16.mxu0 0
    %658 = vmatpush1.bf16.msra.mxu0 %v579
    %659 = vmatprep.subr.bf16.mxu0 0
    %660 = vmatpush2.bf16.msra.mxu0 %v594
    %661 = vmatprep.subr.bf16.mxu0 0
    %662 = vmatpush2.bf16.msra.mxu0 %v593
    %663 = vmatprep.subr.bf16.mxu0 0
    %664 = vmatpush2.bf16.msra.mxu0 %v592
    %665 = vmatprep.subr.bf16.mxu0 0
    %666 = vmatpush2.bf16.msra.mxu0 %v591
    %667 = vmatprep.subr.bf16.mxu0 0
    %668 = vmatpush2.bf16.msra.mxu0 %v590
    %669 = vmatprep.subr.bf16.mxu0 0
    %670 = vmatpush2.bf16.msra.mxu0 %v589
    %671 = vmatprep.subr.bf16.mxu0 0
    %672 = vmatpush2.bf16.msra.mxu0 %v588
    %673 = vmatprep.subr.bf16.mxu0 0
    %674 = vmatpush2.bf16.msra.mxu0 %v587
    %675 = vmatprep.mubr.bf16.mxu0 %v377
    %676 = vmatmul.mubr.bf16.gmra.mxu0 %v376
    %v677 = vpop.f32.mrf.mxu0
    %v678 = vadd.f32 %v449, %v677
    %v679 = vpop.f32.mrf.mxu0
    %v680 = vpop.f32.mrf.mxu0
    %v681 = vpop.f32.mrf.mxu0
    %682 = vdwg.mxu0
    %683 = vmatprep.subr.bf16.mxu0 0
    %684 = vmatpush1.bf16.msra.mxu0 %v602
    %685 = vmatprep.subr.bf16.mxu0 0
    %686 = vmatpush1.bf16.msra.mxu0 %v601
    %687 = vmatprep.subr.bf16.mxu0 0
    %688 = vmatpush1.bf16.msra.mxu0 %v600
    %689 = vmatprep.subr.bf16.mxu0 0
    %690 = vmatpush1.bf16.msra.mxu0 %v599
    %691 = vmatprep.subr.bf16.mxu0 0
    %692 = vmatpush1.bf16.msra.mxu0 %v598
    %693 = vmatprep.subr.bf16.mxu0 0
    %694 = vmatpush1.bf16.msra.mxu0 %v597
    %695 = vmatprep.subr.bf16.mxu0 0
    %696 = vmatpush1.bf16.msra.mxu0 %v596
    %697 = vmatprep.subr.bf16.mxu0 0
    %698 = vmatpush1.bf16.msra.mxu0 %v595
    %699 = vmatprep.subr.bf16.mxu0 0
    %700 = vmatpush2.bf16.msra.mxu0 %v610
    %701 = vmatprep.subr.bf16.mxu0 0
    %702 = vmatpush2.bf16.msra.mxu0 %v609
    %703 = vmatprep.subr.bf16.mxu0 0
    %704 = vmatpush2.bf16.msra.mxu0 %v608
    %705 = vmatprep.subr.bf16.mxu0 0
    %706 = vmatpush2.bf16.msra.mxu0 %v607
    %707 = vmatprep.subr.bf16.mxu0 0
    %708 = vmatpush2.bf16.msra.mxu0 %v606
    %709 = vmatprep.subr.bf16.mxu0 0
    %710 = vmatpush2.bf16.msra.mxu0 %v605
    %711 = vmatprep.subr.bf16.mxu0 0
    %712 = vmatpush2.bf16.msra.mxu0 %v604
    %713 = vmatprep.subr.bf16.mxu0 0
    %714 = vmatpush2.bf16.msra.mxu0 %v603
    %715 = vmatprep.mubr.bf16.mxu0 %v379
    %716 = vmatmul.mubr.bf16.gmra.mxu0 %v378
    %v717 = vpop.f32.mrf.mxu0
    %v718 = vadd.f32 %v678, %v717
    %v719 = vpop.f32.mrf.mxu0
    %v720 = vpop.f32.mrf.mxu0
    %v721 = vpop.f32.mrf.mxu0
    %722 = vdwg.mxu0
    %v723 = vxor.u32 %v718, 2147483648
    %v724 = vmul.f32 %v723, 1.442695
    %v725 = vpow.pop %v724
    %v726 = vadd.f32 %v725, 1.0
    %v727 = vrcp.pop %v726
    %v728 = vmul.f32 1.0, %v727
    %v729 = vpack.c.bf16 %v728, %v728
    %v730 = vld [vmem:[#allocation7] sm:$0xf]
    %v731 = vld [vmem:[#allocation7 + $0x4] sm:$0xf]
    %v732 = vld [vmem:[#allocation7 + $0x8] sm:$0xf]
    %v733 = vld [vmem:[#allocation7 + $0xc] sm:$0xf]
    %v734 = vld [vmem:[#allocation7 + $0x10] sm:$0xf]
    %v735 = vld [vmem:[#allocation7 + $0x14] sm:$0xf]
    %v736 = vld [vmem:[#allocation7 + $0x18] sm:$0xf]
    %v737 = vld [vmem:[#allocation7 + $0x1c] sm:$0xf]
    %v738 = vld [vmem:[#allocation7 + $0x20] sm:$0xf]
    %v739 = vld [vmem:[#allocation7 + $0x24] sm:$0xf]
    %v740 = vld [vmem:[#allocation7 + $0x28] sm:$0xf]
    %v741 = vld [vmem:[#allocation7 + $0x2c] sm:$0xf]
    %v742 = vld [vmem:[#allocation7 + $0x30] sm:$0xf]
    %v743 = vld [vmem:[#allocation7 + $0x34] sm:$0xf]
    %v744 = vld [vmem:[#allocation7 + $0x38] sm:$0xf]
    %v745 = vld [vmem:[#allocation7 + $0x3c] sm:$0xf]
    %v746 = vld [vmem:[%s8] sm:$0x1]
    %v748 = vlaneseq
    %v749 = vshrl.u32 %v748, 7
    %v750 = vsub.s32 0, %v749
    %v751 = vrot.slane %v746, %v750
    %v769 = vunpack.c.l.b16 %v730
    %v770 = vunpack.c.l.b16 %v731
    %v771 = vunpack.c.l.b16 %v732
    %v772 = vunpack.c.l.b16 %v733
    %v773 = vunpack.c.l.b16 %v734
    %v774 = vunpack.c.l.b16 %v735
    %v775 = vunpack.c.l.b16 %v736
    %v776 = vunpack.c.l.b16 %v737
    %v777 = vunpack.c.l.b16 %v738
    %v778 = vunpack.c.l.b16 %v739
    %v779 = vunpack.c.l.b16 %v740
    %v780 = vunpack.c.l.b16 %v741
    %v781 = vunpack.c.l.b16 %v742
    %v782 = vunpack.c.l.b16 %v743
    %v783 = vunpack.c.l.b16 %v744
    %v784 = vunpack.c.l.b16 %v745
    %v785 = vpack.c.b16 %v770, %v769
    %v786 = vpack.c.b16 %v772, %v771
    %v787 = vpack.c.b16 %v774, %v773
    %v788 = vpack.c.b16 %v776, %v775
    %v789 = vpack.c.b16 %v778, %v777
    %v790 = vpack.c.b16 %v780, %v779
    %v791 = vpack.c.b16 %v782, %v781
    %v792 = vpack.c.b16 %v784, %v783
    %801 = vmatprep.subr.bf16.mxu0 0
    %802 = vmatpush1.bf16.msra.mxu0 %v792
    %803 = vmatprep.subr.bf16.mxu0 0
    %804 = vmatpush1.bf16.msra.mxu0 %v791
    %805 = vmatprep.subr.bf16.mxu0 0
    %806 = vmatpush1.bf16.msra.mxu0 %v790
    %807 = vmatprep.subr.bf16.mxu0 0
    %808 = vmatpush1.bf16.msra.mxu0 %v789
    %809 = vmatprep.subr.bf16.mxu0 0
    %810 = vmatpush1.bf16.msra.mxu0 %v788
    %811 = vmatprep.subr.bf16.mxu0 0
    %812 = vmatpush1.bf16.msra.mxu0 %v787
    %813 = vmatprep.subr.bf16.mxu0 0
    %814 = vmatpush1.bf16.msra.mxu0 %v786
    %815 = vmatprep.subr.bf16.mxu0 0
    %816 = vmatpush1.bf16.msra.mxu0 %v785
    %817 = vmatprep.subr.bf16.mxu0 0
    %818 = vmatpush2.bf16.msra.mxu0 0
    %819 = vmatprep.subr.bf16.mxu0 0
    %820 = vmatpush2.bf16.msra.mxu0 0
    %821 = vmatprep.subr.bf16.mxu0 0
    %822 = vmatpush2.bf16.msra.mxu0 0
    %823 = vmatprep.subr.bf16.mxu0 0
    %824 = vmatpush2.bf16.msra.mxu0 0
    %825 = vmatprep.subr.bf16.mxu0 0
    %826 = vmatpush2.bf16.msra.mxu0 0
    %827 = vmatprep.subr.bf16.mxu0 0
    %828 = vmatpush2.bf16.msra.mxu0 0
    %829 = vmatprep.subr.bf16.mxu0 0
    %830 = vmatpush2.bf16.msra.mxu0 0
    %831 = vmatprep.subr.bf16.mxu0 0
    %832 = vmatpush2.bf16.msra.mxu0 0
    %833 = vmatprep.mubr.bf16.mxu0 0
    %834 = vmatmul.mubr.bf16.gmra.mxu0 %v729
    %v835 = vpop.f32.mrf.mxu0
    %v836 = vadd.f32 %v751, %v835
    %v837 = vpop.f32.mrf.mxu0
    %v838 = vpop.f32.mrf.mxu0
    %v839 = vpop.f32.mrf.mxu0
    %840 = vdwg.mxu0
    %841 = vst [vmem:[#allocation8] sm:$0x3] %v836
    // Predicated region
    $region50: #{mv_embedding_forward.1} parent=1 // pred_check
      _
    $region51: #{mv_embedding_forward.1} parent=1 // pred_check_branch
      %843 = sbr.rel (0) target = $region53
    $region52: #{mv_embedding_forward.1} parent=1 // pred_region
      %s845 = ssub.s32 32, 32
      %846 = vsyncadd [#allocation4], %s845
      %s848 = sshll.u32 [#allocation8], 4
      %s849 = int_to_ptr.vmem [resolvable:$true] %s848
      %851 = dma.vmem_to_hbm [thread:$0]  %s849, 32, %s9, [#allocation4]
    $region53: #{mv_embedding_forward.1} parent=1 // pred_fallthru
      _
    // Predicated region
    $region54: #{mv_embedding_forward.1} parent=1 // pred_check
      _
    $region55: #{mv_embedding_forward.1} parent=1 // pred_check_branch
      %853 = sbr.rel (0) target = $region57
    $region56: #{mv_embedding_forward.1} parent=1 // pred_region
      %854 = dma.done [#allocation4], 32
    $region57: #{mv_embedding_forward.1} parent=1 // pred_fallthru
      _
    %855 = vsyncpa [#allocation3], 1
    %856 = vsyncpa [#allocation6], 1
    %857 = vsyncpa [#allocation4], 1

</llo_original>
